<compile_context>
chip_gen: v6e
topology: v6e:2x2x1
jax: 0.10.0
libtpu: 0.0.40
codegen_flags: <defaults>
</compile_context>

<pallas_src>
import jax
import jax.numpy as jnp
from jax.experimental import pallas as pl
from jax.experimental.pallas import tpu as pltpu


def _round_up(n, m):
    return ((n + m - 1) // m) * m


def _cdiv(a, b):
    return -(-a // b)


# ---------------------------------------------------------------------------
# Fused kernel (transposed / lane-dense): one column tile (tile rows of the
# original batch) does the whole ODEFunc forward.
# ---------------------------------------------------------------------------
def _ode_func_kernel(sc_ref, tt_ref, zT_ref,
                     freq_ref, phase_ref,
                     w1T_ref, b1_ref, w2T_ref, b2_ref, w3T_ref, b3_ref,
                     dzT_ref):
    s_shift = sc_ref[0]            # s - start_time      (SMEM scalar)
    inv_span = sc_ref[1]           # 1 / (end - start)   (SMEM scalar)

    ts = tt_ref[0:1, :]                                 # (1, tile)
    t0 = tt_ref[1:2, :]                                 # (1, tile)
    ratio = (ts - t0) * inv_span                        # (1, tile)
    t = s_shift * ratio + t0                            # (1, tile)

    # TGAT-style time encoding: cos(t * freq + phase) -> (z_dim, tile)
    te = jnp.cos(freq_ref[...] * t + phase_ref[...])
    zin = zT_ref[...] + te                              # (z_dim, tile)

    h = jnp.tanh(jnp.dot(w1T_ref[...], zin,
                         preferred_element_type=jnp.float32) + b1_ref[...])
    h = jnp.tanh(jnp.dot(w2T_ref[...], h,
                         preferred_element_type=jnp.float32) + b2_ref[...])
    dz = jnp.dot(w3T_ref[...], h,
                 preferred_element_type=jnp.float32) + b3_ref[...]
    dzT_ref[...] = (dz * ratio).astype(dzT_ref.dtype)   # (z_dim, tile)


# ---------------------------------------------------------------------------
# Wrapper
# ---------------------------------------------------------------------------
def ode_func_forward(params, s, x, start_time, end_time, *, tile_rows=8192):
    """x = (z, ts, t_0) with z:(N, z_dim), ts/t_0:(N, 1). Returns (dz, ts, t_0)."""
    z, ts, t0 = x
    N, z_dim = z.shape
    h_dim = params["w1"].shape[1]
    t_dim = params["freq"].shape[0]
    assert t_dim == z_dim, "time_enc output dim must equal z_dim for `z + te`"

    # Lane-dense layout plumbing (batch on lanes).
    zT = z.T                                             # (z_dim, N)
    tt = jnp.concatenate([ts.reshape(1, N), t0.reshape(1, N)], axis=0)  # (2, N)

    # Tile: multiple of 128, as large as possible, but keep >= 2 grid steps so
    # the "parallel" axis shards across both v7x TensorCores.
    half = _cdiv(N, 2)
    tile = min(tile_rows, _round_up(half, 128))
    tile = max(128, (tile // 128) * 128)
    grid = _cdiv(N, tile)

    # Traced-scalar-safe SMEM scalars.
    start = jnp.asarray(start_time, jnp.float32)
    end = jnp.asarray(end_time, jnp.float32)
    sc = jnp.stack([jnp.asarray(s, jnp.float32) - start,
                    1.0 / (end - start)]).astype(jnp.float32)   # (2,)

    col = lambda i: (0, i)
    full = lambda i: (0, 0)

    dzT = pl.pallas_call(
        _ode_func_kernel,
        out_shape=jax.ShapeDtypeStruct((z_dim, N), jnp.float32),
        grid_spec=pltpu.PrefetchScalarGridSpec(
            num_scalar_prefetch=0,
            grid=(grid,),
            in_specs=[
                pl.BlockSpec(memory_space=pltpu.MemorySpace.SMEM),   # sc
                pl.BlockSpec((2, tile), col),                        # ts/t0 packed
                pl.BlockSpec((z_dim, tile), col),                    # zT
                pl.BlockSpec((z_dim, 1), full),                      # freq
                pl.BlockSpec((z_dim, 1), full),                      # phase
                pl.BlockSpec((h_dim, z_dim), full),                  # w1^T
                pl.BlockSpec((h_dim, 1), full),                      # b1
                pl.BlockSpec((h_dim, h_dim), full),                  # w2^T
                pl.BlockSpec((h_dim, 1), full),                      # b2
                pl.BlockSpec((z_dim, h_dim), full),                  # w3^T
                pl.BlockSpec((z_dim, 1), full),                      # b3
            ],
            out_specs=pl.BlockSpec((z_dim, tile), col),
        ),
        compiler_params=pltpu.CompilerParams(
            dimension_semantics=("parallel",)),
    )(sc, tt, zT,
      params["freq"].reshape(z_dim, 1), params["phase"].reshape(z_dim, 1),
      params["w1"].T, params["b1"].reshape(h_dim, 1),
      params["w2"].T, params["b2"].reshape(h_dim, 1),
      params["w3"].T, params["b3"].reshape(z_dim, 1))

    return dzT.T, ts, t0


# ---------------------------------------------------------------------------
# Pure-JAX reference (mirror of the PyTorch forward)
# ---------------------------------------------------------------------------
def ode_func_reference(params, s, x, start_time, end_time):
    z, ts, t0 = x
    ratio = (ts - t0) / (end_time - start_time)
    t = (s - start_time) * ratio + t0
    te = jnp.cos(t * params["freq"].reshape(1, -1) + params["phase"].reshape(1, -1))
    h = jnp.tanh((z + te) @ params["w1"] + params["b1"])
    h = jnp.tanh(h @ params["w2"] + params["b2"])
    dz = (h @ params["w3"] + params["b3"]) * ratio
    return dz, ts, t0


# ---------------------------------------------------------------------------
if __name__ == "__main__":
    key = jax.random.PRNGKey(0)
    z_dim, h_dim, t_dim = 16, 32, 16      # t_dim == z_dim (z + time_enc(t))
    N = 200                               # ragged: 2 grid steps of tile=128
    start_time, end_time = 0.0, 1.0
    s = 0.37                              # dummy integration variable in [0, 1]

    keys = jax.random.split(key, 11)

    def init(k, shape, fan_in):
        return jax.random.uniform(k, shape, jnp.float32, -1.0, 1.0) / jnp.sqrt(
            jnp.asarray(fan_in, jnp.float32))

    params = {
        "freq":  init(keys[0], (t_dim,), 1),
        "phase": init(keys[1], (t_dim,), 1),
        "w1": init(keys[2], (z_dim, h_dim), z_dim),
        "b1": init(keys[3], (h_dim,), z_dim),
        "w2": init(keys[4], (h_dim, h_dim), h_dim),
        "b2": init(keys[5], (h_dim,), h_dim),
        "w3": init(keys[6], (h_dim, z_dim), h_dim),
        "b3": init(keys[7], (z_dim,), h_dim),
    }

    z = jax.random.normal(keys[8], (N, z_dim), jnp.float32)
    t0 = jax.random.uniform(keys[9], (N, 1), jnp.float32, 0.0, 0.5)
    ts = t0 + jax.random.uniform(keys[10], (N, 1), jnp.float32, 0.0, 0.5)

    dz, ts_out, t0_out = ode_func_forward(params, s, (z, ts, t0),
                                          start_time, end_time)
    jax.block_until_ready(dz)

    dz_ref, _, _ = ode_func_reference(params, s, (z, ts, t0), start_time, end_time)
    assert dz.shape == (N, z_dim)
    assert jnp.allclose(dz, dz_ref, atol=1e-4, rtol=1e-4)
    assert jnp.allclose(ts_out, ts) and jnp.allclose(t0_out, t0)
    print("KERNEL_OK")
</pallas_src>

<mosaic_0001>
module attributes {stable_mosaic.version = 11 : i64} {
  func.func @_ode_func_kernel(%arg0: i32, %arg1: memref<2xf32, #tpu.memory_space<smem>>, %arg2: memref<2x128xf32, #tpu.memory_space<vmem>>, %arg3: memref<16x128xf32, #tpu.memory_space<vmem>>, %arg4: memref<16x1xf32, #tpu.memory_space<vmem>>, %arg5: memref<16x1xf32, #tpu.memory_space<vmem>>, %arg6: memref<32x16xf32, #tpu.memory_space<vmem>>, %arg7: memref<32x1xf32, #tpu.memory_space<vmem>>, %arg8: memref<32x32xf32, #tpu.memory_space<vmem>>, %arg9: memref<32x1xf32, #tpu.memory_space<vmem>>, %arg10: memref<16x32xf32, #tpu.memory_space<vmem>>, %arg11: memref<16x1xf32, #tpu.memory_space<vmem>>, %arg12: memref<16x128xf32, #tpu.memory_space<vmem>>) attributes {dimension_semantics = [#tpu.dimension_semantics<parallel>], iteration_bounds = array<i64: 2>, scalar_prefetch = 0 : i64, scratch_operands = 0 : i64, tpu.core_type = #tpu.core_type<tc>, window_params = [{transform_indices = @transform_0, window_bounds = array<i64: 2>}, {transform_indices = @transform_1, window_bounds = array<i64: 2, 128>}, {transform_indices = @transform_2, window_bounds = array<i64: 16, 128>}, {pipeline_mode = #tpu.pipeline_mode<synchronous>, transform_indices = @transform_3, window_bounds = array<i64: 16, 1>}, {pipeline_mode = #tpu.pipeline_mode<synchronous>, transform_indices = @transform_4, window_bounds = array<i64: 16, 1>}, {pipeline_mode = #tpu.pipeline_mode<synchronous>, transform_indices = @transform_5, window_bounds = array<i64: 32, 16>}, {pipeline_mode = #tpu.pipeline_mode<synchronous>, transform_indices = @transform_6, window_bounds = array<i64: 32, 1>}, {pipeline_mode = #tpu.pipeline_mode<synchronous>, transform_indices = @transform_7, window_bounds = array<i64: 32, 32>}, {pipeline_mode = #tpu.pipeline_mode<synchronous>, transform_indices = @transform_8, window_bounds = array<i64: 32, 1>}, {pipeline_mode = #tpu.pipeline_mode<synchronous>, transform_indices = @transform_9, window_bounds = array<i64: 16, 32>}, {pipeline_mode = #tpu.pipeline_mode<synchronous>, transform_indices = @transform_10, window_bounds = array<i64: 16, 1>}, {transform_indices = @transform_11, window_bounds = array<i64: 16, 128>}]} {
    %c0 = arith.constant 0 : index
    %0 = memref.load %arg1[%c0] : memref<2xf32, #tpu.memory_space<smem>>
    %c1 = arith.constant 1 : index
    %1 = memref.load %arg1[%c1] : memref<2xf32, #tpu.memory_space<smem>>
    %c0_0 = arith.constant 0 : index
    %c0_1 = arith.constant 0 : index
    %2 = vector.load %arg2[%c0_0, %c0_1] : memref<2x128xf32, #tpu.memory_space<vmem>>, vector<1x128xf32>
    %c1_2 = arith.constant 1 : index
    %c0_3 = arith.constant 0 : index
    %3 = vector.load %arg2[%c1_2, %c0_3] : memref<2x128xf32, #tpu.memory_space<vmem>>, vector<1x128xf32>
    %4 = arith.subf %2, %3 : vector<1x128xf32>
    %5 = vector.broadcast %1 : f32 to vector<1x128xf32>
    %6 = arith.mulf %4, %5 : vector<1x128xf32>
    %7 = vector.broadcast %0 : f32 to vector<1x128xf32>
    %8 = arith.mulf %7, %6 : vector<1x128xf32>
    %9 = arith.addf %8, %3 : vector<1x128xf32>
    %c0_4 = arith.constant 0 : index
    %c0_5 = arith.constant 0 : index
    %10 = vector.load %arg4[%c0_4, %c0_5] : memref<16x1xf32, #tpu.memory_space<vmem>>, vector<16x1xf32>
    %11 = vector.broadcast %10 : vector<16x1xf32> to vector<16x128xf32>
    %12 = vector.broadcast %9 : vector<1x128xf32> to vector<16x128xf32>
    %13 = arith.mulf %11, %12 : vector<16x128xf32>
    %c0_6 = arith.constant 0 : index
    %c0_7 = arith.constant 0 : index
    %14 = vector.load %arg5[%c0_6, %c0_7] : memref<16x1xf32, #tpu.memory_space<vmem>>, vector<16x1xf32>
    %15 = vector.broadcast %14 : vector<16x1xf32> to vector<16x128xf32>
    %16 = arith.addf %13, %15 : vector<16x128xf32>
    %17 = math.cos %16 : vector<16x128xf32>
    %c0_8 = arith.constant 0 : index
    %c0_9 = arith.constant 0 : index
    %18 = vector.load %arg3[%c0_8, %c0_9] : memref<16x128xf32, #tpu.memory_space<vmem>>, vector<16x128xf32>
    %19 = arith.addf %18, %17 : vector<16x128xf32>
    %c0_10 = arith.constant 0 : index
    %c0_11 = arith.constant 0 : index
    %20 = vector.load %arg6[%c0_10, %c0_11] : memref<32x16xf32, #tpu.memory_space<vmem>>, vector<32x16xf32>
    %cst = arith.constant dense<0.000000e+00> : vector<32x128xf32>
    %21 = tpu.matmul %20, %19, %cst {dimension_numbers = #tpu.dot_dimension_numbers<[1], [0], [0], [1], [0, 0, 1, 1], [], []>} : vector<32x16xf32>, vector<16x128xf32>, vector<32x128xf32> -> vector<32x128xf32>
    %c0_12 = arith.constant 0 : index
    %c0_13 = arith.constant 0 : index
    %22 = vector.load %arg7[%c0_12, %c0_13] : memref<32x1xf32, #tpu.memory_space<vmem>>, vector<32x1xf32>
    %23 = vector.broadcast %22 : vector<32x1xf32> to vector<32x128xf32>
    %24 = arith.addf %21, %23 : vector<32x128xf32>
    %25 = math.tanh %24 : vector<32x128xf32>
    %c0_14 = arith.constant 0 : index
    %c0_15 = arith.constant 0 : index
    %26 = vector.load %arg8[%c0_14, %c0_15] : memref<32x32xf32, #tpu.memory_space<vmem>>, vector<32x32xf32>
    %cst_16 = arith.constant dense<0.000000e+00> : vector<32x128xf32>
    %27 = tpu.matmul %26, %25, %cst_16 {dimension_numbers = #tpu.dot_dimension_numbers<[1], [0], [0], [1], [0, 0, 1, 1], [], []>} : vector<32x32xf32>, vector<32x128xf32>, vector<32x128xf32> -> vector<32x128xf32>
    %c0_17 = arith.constant 0 : index
    %c0_18 = arith.constant 0 : index
    %28 = vector.load %arg9[%c0_17, %c0_18] : memref<32x1xf32, #tpu.memory_space<vmem>>, vector<32x1xf32>
    %29 = vector.broadcast %28 : vector<32x1xf32> to vector<32x128xf32>
    %30 = arith.addf %27, %29 : vector<32x128xf32>
    %31 = math.tanh %30 : vector<32x128xf32>
    %c0_19 = arith.constant 0 : index
    %c0_20 = arith.constant 0 : index
    %32 = vector.load %arg10[%c0_19, %c0_20] : memref<16x32xf32, #tpu.memory_space<vmem>>, vector<16x32xf32>
    %cst_21 = arith.constant dense<0.000000e+00> : vector<16x128xf32>
    %33 = tpu.matmul %32, %31, %cst_21 {dimension_numbers = #tpu.dot_dimension_numbers<[1], [0], [0], [1], [0, 0, 1, 1], [], []>} : vector<16x32xf32>, vector<32x128xf32>, vector<16x128xf32> -> vector<16x128xf32>
    %c0_22 = arith.constant 0 : index
    %c0_23 = arith.constant 0 : index
    %34 = vector.load %arg11[%c0_22, %c0_23] : memref<16x1xf32, #tpu.memory_space<vmem>>, vector<16x1xf32>
    %35 = vector.broadcast %34 : vector<16x1xf32> to vector<16x128xf32>
    %36 = arith.addf %33, %35 : vector<16x128xf32>
    %37 = vector.broadcast %6 : vector<1x128xf32> to vector<16x128xf32>
    %38 = arith.mulf %36, %37 : vector<16x128xf32>
    %c0_24 = arith.constant 0 : index
    %c0_25 = arith.constant 0 : index
    %39 = vector.load %arg12[%c0_24, %c0_25] : memref<16x128xf32, #tpu.memory_space<vmem>>, vector<16x128xf32>
    tpu.vector_store %arg12[%c0_24, %c0_25], %38 {strides = array<i32>} : memref<16x128xf32, #tpu.memory_space<vmem>>, vector<16x128xf32>,
    return
  }
  func.func @transform_0(%arg0: i32) -> i32 {
    %c0_i32 = arith.constant 0 : i32
    %c0_i32_0 = arith.constant 0 : i32
    return %c0_i32 : i32
  }
  func.func @transform_1(%arg0: i32) -> (i32, i32) {
    %c0_i32 = arith.constant 0 : i32
    %c0_i32_0 = arith.constant 0 : i32
    return %c0_i32, %arg0 : i32, i32
  }
  func.func @transform_2(%arg0: i32) -> (i32, i32) {
    %c0_i32 = arith.constant 0 : i32
    %c0_i32_0 = arith.constant 0 : i32
    return %c0_i32, %arg0 : i32, i32
  }
  func.func @transform_3(%arg0: i32) -> (i32, i32) {
    %c0_i32 = arith.constant 0 : i32
    %c0_i32_0 = arith.constant 0 : i32
    %c0_i32_1 = arith.constant 0 : i32
    return %c0_i32, %c0_i32_0 : i32, i32
  }
  func.func @transform_4(%arg0: i32) -> (i32, i32) {
    %c0_i32 = arith.constant 0 : i32
    %c0_i32_0 = arith.constant 0 : i32
    %c0_i32_1 = arith.constant 0 : i32
    return %c0_i32, %c0_i32_0 : i32, i32
  }
  func.func @transform_5(%arg0: i32) -> (i32, i32) {
    %c0_i32 = arith.constant 0 : i32
    %c0_i32_0 = arith.constant 0 : i32
    %c0_i32_1 = arith.constant 0 : i32
    return %c0_i32, %c0_i32_0 : i32, i32
  }
  func.func @transform_6(%arg0: i32) -> (i32, i32) {
    %c0_i32 = arith.constant 0 : i32
    %c0_i32_0 = arith.constant 0 : i32
    %c0_i32_1 = arith.constant 0 : i32
    return %c0_i32, %c0_i32_0 : i32, i32
  }
  func.func @transform_7(%arg0: i32) -> (i32, i32) {
    %c0_i32 = arith.constant 0 : i32
    %c0_i32_0 = arith.constant 0 : i32
    %c0_i32_1 = arith.constant 0 : i32
    return %c0_i32, %c0_i32_0 : i32, i32
  }
  func.func @transform_8(%arg0: i32) -> (i32, i32) {
    %c0_i32 = arith.constant 0 : i32
    %c0_i32_0 = arith.constant 0 : i32
    %c0_i32_1 = arith.constant 0 : i32
    return %c0_i32, %c0_i32_0 : i32, i32
  }
  func.func @transform_9(%arg0: i32) -> (i32, i32) {
    %c0_i32 = arith.constant 0 : i32
    %c0_i32_0 = arith.constant 0 : i32
    %c0_i32_1 = arith.constant 0 : i32
    return %c0_i32, %c0_i32_0 : i32, i32
  }
  func.func @transform_10(%arg0: i32) -> (i32, i32) {
    %c0_i32 = arith.constant 0 : i32
    %c0_i32_0 = arith.constant 0 : i32
    %c0_i32_1 = arith.constant 0 : i32
    return %c0_i32, %c0_i32_0 : i32, i32
  }
  func.func @transform_11(%arg0: i32) -> (i32, i32) {
    %c0_i32 = arith.constant 0 : i32
    %c0_i32_0 = arith.constant 0 : i32
    return %c0_i32, %arg0 : i32, i32
  }
}

</mosaic_0001>

<llo_original>
// kernel: tpu_custom_call.1
$region0: #{tpu_custom_call.1}
  #allocation0 [shape = 'u32[]', space=smem, size = 0x4, offset = 0x4, fixed_abs, tag = 'smem constant byte address 0x4 - core index']
  #allocation1 [shape = 'u32[144,128]{1,0:T(1,128)}', space=vmem, size = 0x12000, scoped, tag = 'internal scratch']
  %s0 = inlined_call_operand.vmem [shape: f32[2], index: 0, kind: input, shape index: {}]
  %s1 = inlined_call_operand.vmem [shape: f32[2,200], index: 1, kind: input, shape index: {}]
  %s2 = inlined_call_operand.vmem [shape: f32[16,200], index: 2, kind: input, shape index: {}]
  %s3 = inlined_call_operand.vmem [shape: f32[16,1], index: 3, kind: input, shape index: {}]
  %s4 = inlined_call_operand.vmem [shape: f32[16,1], index: 4, kind: input, shape index: {}]
  %s5 = inlined_call_operand.vmem [shape: f32[32,16], index: 5, kind: input, shape index: {}]
  %s6 = inlined_call_operand.vmem [shape: f32[32,1], index: 6, kind: input, shape index: {}]
  %s7 = inlined_call_operand.vmem [shape: f32[32,32], index: 7, kind: input, shape index: {}]
  %s8 = inlined_call_operand.vmem [shape: f32[32,1], index: 8, kind: input, shape index: {}]
  %s9 = inlined_call_operand.vmem [shape: f32[16,32], index: 9, kind: input, shape index: {}]
  %s10 = inlined_call_operand.vmem [shape: f32[16,1], index: 10, kind: input, shape index: {}]
  %s11 = inlined_call_operand.hbm [shape: f32[16,200], index: 11, kind: output, shape index: {}]
  %s12 = sld [smem:[#allocation0]]
  $region119: #{tpu_custom_call.1} parent=0
    _
  %s14 = ssub.s32 1, %s12
  %s15 = scalar_select 0, %s14, %s12
  $region1: #{tpu_custom_call.1} parent=0
    #allocation2 [shape = 'u8[512]{0}', space=smem, size = 0x200, scoped, tag = 'input window, operand 0, single buffered']
    #allocation3 [shape = 's32[2]{0}', space=sflag, size = 0x8, scoped, tag = 'scoped memory for tpu_custom_call.1']
    #allocation4 [shape = 's32[2]{0}', space=sflag, size = 0x8, scoped, tag = 'scoped memory for tpu_custom_call.1']
    #allocation5 [shape = 'u8[16384]{0}', space=vmem, size = 0x4000, scoped, tag = 'input window, operand 2']
    #allocation6 [shape = 'u8[16384]{0}', space=vmem, size = 0x4000, scoped, tag = 'output window, operand 0']
    %16 = vsyncpa [#allocation4], 0
    %17 = vsyncpa [#allocation3], 0
    %s18 = scalar_lea.sflag [#allocation3], 1
    %19 = vsyncpa %s18, 0
    loop: start=0, step=1, limit=4
    $region2: #{tpu_custom_call.1} parent=1 // loop_pre_header
      _
    $region3: #{tpu_custom_call.1} parent=1 // loop_header
      %s21 = sphi 0, %s25
      %p22 = scmp.ge.s32.totalorder %s21, 4
      %s29 = sphi 0, %s29
      %s31 = sphi 0, %s29
      %s32 = sphi 0, %s31
      %s46 = sphi 0, %s32
      %s52 = sphi 0, %s54
      %s55 = sphi 0, %s52
      %s56 = sphi 0, %s55
      %s72 = sphi 0, %s56
      %s78 = sphi 0, %s80
      %s81 = sphi 0, %s78
      %s82 = sphi 0, %s81
      %s98 = sphi 0, %s82
      %s102 = sphi 0, %s102
      %s104 = sphi 0, %s102
      %s105 = sphi 0, %s104
      %s119 = sphi 0, %s105
      %s123 = sphi 0, %s123
      %s125 = sphi 0, %s123
      %s126 = sphi 0, %s125
      %s140 = sphi 0, %s126
      %s144 = sphi 0, %s144
      %s146 = sphi 0, %s144
      %s147 = sphi 0, %s146
      %s161 = sphi 0, %s147
      %s165 = sphi 0, %s165
      %s167 = sphi 0, %s165
      %s168 = sphi 0, %s167
      %s182 = sphi 0, %s168
      %s186 = sphi 0, %s186
      %s188 = sphi 0, %s186
      %s189 = sphi 0, %s188
      %s203 = sphi 0, %s189
      %s207 = sphi 0, %s207
      %s209 = sphi 0, %s207
      %s210 = sphi 0, %s209
      %s224 = sphi 0, %s210
      %s228 = sphi 0, %s228
      %s230 = sphi 0, %s228
      %s231 = sphi 0, %s230
      %s245 = sphi 0, %s231
      %s249 = sphi 0, %s249
      %s251 = sphi 0, %s249
      %s252 = sphi 0, %s251
      %s266 = sphi 0, %s252
      %s272 = sphi 0, %s274
      %s275 = sphi 0, %s272
      %s276 = sphi 0, %s275
      %s292 = sphi 0, %s276
    $region4: #{tpu_custom_call.1} parent=1 // loop_header_branch
      %24 = sbr.rel (%p22) target = $region8
    $region5: #{tpu_custom_call.1} parent=1 // loop_body
      %s26 = ssub.s32 %s21, 1
      %s27 = ssub.s32 %s21, 2
      %s28 = sadd.s32 %s21, 1
      %s30 = sadd.s32 %s29, 1
      %p33 = scmp.eq.s32.totalorder %s21, 1
      %p34 = scmp.ne.s32.totalorder %s29, %s31
      %p35 = scmp.eq.s32.totalorder %s21, 0
      %p36 = por %p34, %p35
      %p37 = scmp.ne.s32.totalorder %s29, %s31
      %p38 = scmp.eq.s32.totalorder %s26, 1
      %p39 = por %p37, %p38
      %p40 = scmp.ne.s32.totalorder %s31, %s32
      %p41 = scmp.eq.s32.totalorder %s26, 0
      %p42 = por %p40, %p41
      %p43 = scmp.ne.s32.totalorder %s31, %s32
      %p44 = scmp.eq.s32.totalorder %s27, 1
      %p45 = por %p43, %p44
      %p47 = scmp.ne.s32.totalorder %s32, %s46
      %p48 = scmp.eq.s32.totalorder %s27, 0
      %p49 = por %p47, %p48
      %s50 = ssub.s32 %s21, %s28
      %p51 = scmp.eq.s32.totalorder %s50, 0
      %s53 = sadd.s32 %s52, 1
      %s54 = scalar_select %p51, %s52, %s53
      %p57 = pneg %p51
      %p58 = scmp.eq.s32.totalorder %s21, 1
      %p59 = por %p57, %p58
      %p60 = scmp.ne.s32.totalorder %s52, %s55
      %p61 = scmp.eq.s32.totalorder %s21, 0
      %p62 = por %p60, %p61
      %p63 = scmp.ne.s32.totalorder %s52, %s55
      %p64 = scmp.eq.s32.totalorder %s26, 1
      %p65 = por %p63, %p64
      %p66 = scmp.ne.s32.totalorder %s55, %s56
      %p67 = scmp.eq.s32.totalorder %s26, 0
      %p68 = por %p66, %p67
      %p69 = scmp.ne.s32.totalorder %s55, %s56
      %p70 = scmp.eq.s32.totalorder %s27, 1
      %p71 = por %p69, %p70
      %p73 = scmp.ne.s32.totalorder %s56, %s72
      %p74 = scmp.eq.s32.totalorder %s27, 0
      %p75 = por %p73, %p74
      %s76 = ssub.s32 %s21, %s28
      %p77 = scmp.eq.s32.totalorder %s76, 0
      %s79 = sadd.s32 %s78, 1
      %s80 = scalar_select %p77, %s78, %s79
      %p83 = pneg %p77
      %p84 = scmp.eq.s32.totalorder %s21, 1
      %p85 = por %p83, %p84
      %p86 = scmp.ne.s32.totalorder %s78, %s81
      %p87 = scmp.eq.s32.totalorder %s21, 0
      %p88 = por %p86, %p87
      %p89 = scmp.ne.s32.totalorder %s78, %s81
      %p90 = scmp.eq.s32.totalorder %s26, 1
      %p91 = por %p89, %p90
      %p92 = scmp.ne.s32.totalorder %s81, %s82
      %p93 = scmp.eq.s32.totalorder %s26, 0
      %p94 = por %p92, %p93
      %p95 = scmp.ne.s32.totalorder %s81, %s82
      %p96 = scmp.eq.s32.totalorder %s27, 1
      %p97 = por %p95, %p96
      %p99 = scmp.ne.s32.totalorder %s82, %s98
      %p100 = scmp.eq.s32.totalorder %s27, 0
      %p101 = por %p99, %p100
      %s103 = sadd.s32 %s102, 1
      %p106 = scmp.eq.s32.totalorder %s21, 1
      %p107 = scmp.ne.s32.totalorder %s102, %s104
      %p108 = scmp.eq.s32.totalorder %s21, 0
      %p109 = por %p107, %p108
      %p110 = scmp.ne.s32.totalorder %s102, %s104
      %p111 = scmp.eq.s32.totalorder %s26, 1
      %p112 = por %p110, %p111
      %p113 = scmp.ne.s32.totalorder %s104, %s105
      %p114 = scmp.eq.s32.totalorder %s26, 0
      %p115 = por %p113, %p114
      %p116 = scmp.ne.s32.totalorder %s104, %s105
      %p117 = scmp.eq.s32.totalorder %s27, 1
      %p118 = por %p116, %p117
      %p120 = scmp.ne.s32.totalorder %s105, %s119
      %p121 = scmp.eq.s32.totalorder %s27, 0
      %p122 = por %p120, %p121
      %s124 = sadd.s32 %s123, 1
      %p127 = scmp.eq.s32.totalorder %s21, 1
      %p128 = scmp.ne.s32.totalorder %s123, %s125
      %p129 = scmp.eq.s32.totalorder %s21, 0
      %p130 = por %p128, %p129
      %p131 = scmp.ne.s32.totalorder %s123, %s125
      %p132 = scmp.eq.s32.totalorder %s26, 1
      %p133 = por %p131, %p132
      %p134 = scmp.ne.s32.totalorder %s125, %s126
      %p135 = scmp.eq.s32.totalorder %s26, 0
      %p136 = por %p134, %p135
      %p137 = scmp.ne.s32.totalorder %s125, %s126
      %p138 = scmp.eq.s32.totalorder %s27, 1
      %p139 = por %p137, %p138
      %p141 = scmp.ne.s32.totalorder %s126, %s140
      %p142 = scmp.eq.s32.totalorder %s27, 0
      %p143 = por %p141, %p142
      %s145 = sadd.s32 %s144, 1
      %p148 = scmp.eq.s32.totalorder %s21, 1
      %p149 = scmp.ne.s32.totalorder %s144, %s146
      %p150 = scmp.eq.s32.totalorder %s21, 0
      %p151 = por %p149, %p150
      %p152 = scmp.ne.s32.totalorder %s144, %s146
      %p153 = scmp.eq.s32.totalorder %s26, 1
      %p154 = por %p152, %p153
      %p155 = scmp.ne.s32.totalorder %s146, %s147
      %p156 = scmp.eq.s32.totalorder %s26, 0
      %p157 = por %p155, %p156
      %p158 = scmp.ne.s32.totalorder %s146, %s147
      %p159 = scmp.eq.s32.totalorder %s27, 1
      %p160 = por %p158, %p159
      %p162 = scmp.ne.s32.totalorder %s147, %s161
      %p163 = scmp.eq.s32.totalorder %s27, 0
      %p164 = por %p162, %p163
      %s166 = sadd.s32 %s165, 1
      %p169 = scmp.eq.s32.totalorder %s21, 1
      %p170 = scmp.ne.s32.totalorder %s165, %s167
      %p171 = scmp.eq.s32.totalorder %s21, 0
      %p172 = por %p170, %p171
      %p173 = scmp.ne.s32.totalorder %s165, %s167
      %p174 = scmp.eq.s32.totalorder %s26, 1
      %p175 = por %p173, %p174
      %p176 = scmp.ne.s32.totalorder %s167, %s168
      %p177 = scmp.eq.s32.totalorder %s26, 0
      %p178 = por %p176, %p177
      %p179 = scmp.ne.s32.totalorder %s167, %s168
      %p180 = scmp.eq.s32.totalorder %s27, 1
      %p181 = por %p179, %p180
      %p183 = scmp.ne.s32.totalorder %s168, %s182
      %p184 = scmp.eq.s32.totalorder %s27, 0
      %p185 = por %p183, %p184
      %s187 = sadd.s32 %s186, 1
      %p190 = scmp.eq.s32.totalorder %s21, 1
      %p191 = scmp.ne.s32.totalorder %s186, %s188
      %p192 = scmp.eq.s32.totalorder %s21, 0
      %p193 = por %p191, %p192
      %p194 = scmp.ne.s32.totalorder %s186, %s188
      %p195 = scmp.eq.s32.totalorder %s26, 1
      %p196 = por %p194, %p195
      %p197 = scmp.ne.s32.totalorder %s188, %s189
      %p198 = scmp.eq.s32.totalorder %s26, 0
      %p199 = por %p197, %p198
      %p200 = scmp.ne.s32.totalorder %s188, %s189
      %p201 = scmp.eq.s32.totalorder %s27, 1
      %p202 = por %p200, %p201
      %p204 = scmp.ne.s32.totalorder %s189, %s203
      %p205 = scmp.eq.s32.totalorder %s27, 0
      %p206 = por %p204, %p205
      %s208 = sadd.s32 %s207, 1
      %p211 = scmp.eq.s32.totalorder %s21, 1
      %p212 = scmp.ne.s32.totalorder %s207, %s209
      %p213 = scmp.eq.s32.totalorder %s21, 0
      %p214 = por %p212, %p213
      %p215 = scmp.ne.s32.totalorder %s207, %s209
      %p216 = scmp.eq.s32.totalorder %s26, 1
      %p217 = por %p215, %p216
      %p218 = scmp.ne.s32.totalorder %s209, %s210
      %p219 = scmp.eq.s32.totalorder %s26, 0
      %p220 = por %p218, %p219
      %p221 = scmp.ne.s32.totalorder %s209, %s210
      %p222 = scmp.eq.s32.totalorder %s27, 1
      %p223 = por %p221, %p222
      %p225 = scmp.ne.s32.totalorder %s210, %s224
      %p226 = scmp.eq.s32.totalorder %s27, 0
      %p227 = por %p225, %p226
      %s229 = sadd.s32 %s228, 1
      %p232 = scmp.eq.s32.totalorder %s21, 1
      %p233 = scmp.ne.s32.totalorder %s228, %s230
      %p234 = scmp.eq.s32.totalorder %s21, 0
      %p235 = por %p233, %p234
      %p236 = scmp.ne.s32.totalorder %s228, %s230
      %p237 = scmp.eq.s32.totalorder %s26, 1
      %p238 = por %p236, %p237
      %p239 = scmp.ne.s32.totalorder %s230, %s231
      %p240 = scmp.eq.s32.totalorder %s26, 0
      %p241 = por %p239, %p240
      %p242 = scmp.ne.s32.totalorder %s230, %s231
      %p243 = scmp.eq.s32.totalorder %s27, 1
      %p244 = por %p242, %p243
      %p246 = scmp.ne.s32.totalorder %s231, %s245
      %p247 = scmp.eq.s32.totalorder %s27, 0
      %p248 = por %p246, %p247
      %s250 = sadd.s32 %s249, 1
      %p253 = scmp.eq.s32.totalorder %s21, 1
      %p254 = scmp.ne.s32.totalorder %s249, %s251
      %p255 = scmp.eq.s32.totalorder %s21, 0
      %p256 = por %p254, %p255
      %p257 = scmp.ne.s32.totalorder %s249, %s251
      %p258 = scmp.eq.s32.totalorder %s26, 1
      %p259 = por %p257, %p258
      %p260 = scmp.ne.s32.totalorder %s251, %s252
      %p261 = scmp.eq.s32.totalorder %s26, 0
      %p262 = por %p260, %p261
      %p263 = scmp.ne.s32.totalorder %s251, %s252
      %p264 = scmp.eq.s32.totalorder %s27, 1
      %p265 = por %p263, %p264
      %p267 = scmp.ne.s32.totalorder %s252, %s266
      %p268 = scmp.eq.s32.totalorder %s27, 0
      %p269 = por %p267, %p268
      %s270 = ssub.s32 %s21, %s28
      %p271 = scmp.eq.s32.totalorder %s270, 0
      %s273 = sadd.s32 %s272, 1
      %s274 = scalar_select %p271, %s272, %s273
      %p277 = pneg %p271
      %p278 = scmp.eq.s32.totalorder %s21, 1
      %p279 = por %p277, %p278
      %p280 = scmp.ne.s32.totalorder %s272, %s275
      %p281 = scmp.eq.s32.totalorder %s21, 0
      %p282 = por %p280, %p281
      %p283 = scmp.ne.s32.totalorder %s272, %s275
      %p284 = scmp.eq.s32.totalorder %s26, 1
      %p285 = por %p283, %p284
      %p286 = scmp.ne.s32.totalorder %s275, %s276
      %p287 = scmp.eq.s32.totalorder %s26, 0
      %p288 = por %p286, %p287
      %p289 = scmp.ne.s32.totalorder %s275, %s276
      %p290 = scmp.eq.s32.totalorder %s27, 1
      %p291 = por %p289, %p290
      %p293 = scmp.ne.s32.totalorder %s276, %s292
      %p294 = scmp.eq.s32.totalorder %s27, 0
      %p295 = por %p293, %p294
      %p296 = scmp.le.s32.totalorder 1, %s21
      %p297 = scmp.lt.s32.totalorder %s21, 3
      %p298 = pnand %p296, %p297
      %p299 = pneg %p298
      // Predicated region
      $region9: #{tpu_custom_call.1} parent=5 // pred_check
        _
      $region10: #{tpu_custom_call.1} parent=5 // pred_check_branch
        %301 = sbr.rel (%p298) target = $region12
      $region11: #{tpu_custom_call.1} parent=5 // pred_region
        %s302 = ssub.s32 %s21, 1
        // Predicated region
        $region13: #{tpu_custom_call.1} parent=11 // pred_check
          %p303 = pneg %p42
        $region14: #{tpu_custom_call.1} parent=11 // pred_check_branch
          %305 = sbr.rel (%p303) target = $region16
        $region15: #{tpu_custom_call.1} parent=11 // pred_region
          %s307 = ssub.s32 16, 16
          %308 = vsyncadd [#allocation4], %s307
          %s310 = sshll.u32 %s0, 4
          %s311 = int_to_ptr.vmem [resolvable:$true] %s310
          %313 = dma.vmem_to_smem %s311, 16, [#allocation2], [#allocation4]
        $region16: #{tpu_custom_call.1} parent=11 // pred_fallthru
          _
        // Predicated region
        $region17: #{tpu_custom_call.1} parent=11 // pred_check
          %p314 = pneg %p115
        $region18: #{tpu_custom_call.1} parent=11 // pred_check_branch
          %316 = sbr.rel (%p314) target = $region20
        $region19: #{tpu_custom_call.1} parent=11 // pred_region
          _
        $region20: #{tpu_custom_call.1} parent=11 // pred_fallthru
          _
        // Predicated region
        $region21: #{tpu_custom_call.1} parent=11 // pred_check
          %p317 = pneg %p136
        $region22: #{tpu_custom_call.1} parent=11 // pred_check_branch
          %319 = sbr.rel (%p317) target = $region24
        $region23: #{tpu_custom_call.1} parent=11 // pred_region
          _
        $region24: #{tpu_custom_call.1} parent=11 // pred_fallthru
          _
        // Predicated region
        $region25: #{tpu_custom_call.1} parent=11 // pred_check
          %p320 = pneg %p157
        $region26: #{tpu_custom_call.1} parent=11 // pred_check_branch
          %322 = sbr.rel (%p320) target = $region28
        $region27: #{tpu_custom_call.1} parent=11 // pred_region
          _
        $region28: #{tpu_custom_call.1} parent=11 // pred_fallthru
          _
        // Predicated region
        $region29: #{tpu_custom_call.1} parent=11 // pred_check
          %p323 = pneg %p178
        $region30: #{tpu_custom_call.1} parent=11 // pred_check_branch
          %325 = sbr.rel (%p323) target = $region32
        $region31: #{tpu_custom_call.1} parent=11 // pred_region
          _
        $region32: #{tpu_custom_call.1} parent=11 // pred_fallthru
          _
        // Predicated region
        $region33: #{tpu_custom_call.1} parent=11 // pred_check
          %p326 = pneg %p199
        $region34: #{tpu_custom_call.1} parent=11 // pred_check_branch
          %328 = sbr.rel (%p326) target = $region36
        $region35: #{tpu_custom_call.1} parent=11 // pred_region
          _
        $region36: #{tpu_custom_call.1} parent=11 // pred_fallthru
          _
        // Predicated region
        $region37: #{tpu_custom_call.1} parent=11 // pred_check
          %p329 = pneg %p220
        $region38: #{tpu_custom_call.1} parent=11 // pred_check_branch
          %331 = sbr.rel (%p329) target = $region40
        $region39: #{tpu_custom_call.1} parent=11 // pred_region
          _
        $region40: #{tpu_custom_call.1} parent=11 // pred_fallthru
          _
        // Predicated region
        $region41: #{tpu_custom_call.1} parent=11 // pred_check
          %p332 = pneg %p241
        $region42: #{tpu_custom_call.1} parent=11 // pred_check_branch
          %334 = sbr.rel (%p332) target = $region44
        $region43: #{tpu_custom_call.1} parent=11 // pred_region
          _
        $region44: #{tpu_custom_call.1} parent=11 // pred_fallthru
          _
        // Predicated region
        $region45: #{tpu_custom_call.1} parent=11 // pred_check
          %p335 = pneg %p262
        $region46: #{tpu_custom_call.1} parent=11 // pred_check_branch
          %337 = sbr.rel (%p335) target = $region48
        $region47: #{tpu_custom_call.1} parent=11 // pred_region
          _
        $region48: #{tpu_custom_call.1} parent=11 // pred_fallthru
          _
      $region12: #{tpu_custom_call.1} parent=5 // pred_fallthru
        _
      %p338 = scmp.lt.s32.totalorder %s21, 2
      // Predicated region
      $region49: #{tpu_custom_call.1} parent=5 // pred_check
        %p339 = pneg %p338
      $region50: #{tpu_custom_call.1} parent=5 // pred_check_branch
        %341 = sbr.rel (%p339) target = $region52
      $region51: #{tpu_custom_call.1} parent=5 // pred_region
        // Predicated region
        $region53: #{tpu_custom_call.1} parent=51 // pred_check
          %p342 = pneg %p62
        $region54: #{tpu_custom_call.1} parent=51 // pred_check_branch
          %344 = sbr.rel (%p342) target = $region56
        $region55: #{tpu_custom_call.1} parent=51 // pred_region
          %p345 = scmp.lt.s32.totalorder %s21, 1
          %s346 = scalar_select %p345, %s21, 1
          %s347 = smul.addr %s346, 2
          %s348 = scalar_lea.vmem %s1, %s347
        $region56: #{tpu_custom_call.1} parent=51 // pred_fallthru
          _
        // Predicated region
        $region57: #{tpu_custom_call.1} parent=51 // pred_check
          %p349 = pneg %p88
        $region58: #{tpu_custom_call.1} parent=51 // pred_check_branch
          %351 = sbr.rel (%p349) target = $region60
        $region59: #{tpu_custom_call.1} parent=51 // pred_region
          %s352 = sand.u32 %s78, 1
          %s353 = sand.u32 %s78, 1
          %s354 = smul.addr %s353, 16
          %s355 = scalar_lea.vmem [#allocation5], %s354
          %s356 = smul.addr %s21, 8
          %s357 = scalar_lea.vmem %s2, %s356
          // Predicated region
          $region61: #{tpu_custom_call.1} parent=59 // pred_check
            _
          $region62: #{tpu_custom_call.1} parent=59 // pred_check_branch
            %359 = sbr.rel (0) target = $region64
          $region63: #{tpu_custom_call.1} parent=59 // pred_region
            // Predicated region
            $region65: #{tpu_custom_call.1} parent=63 // pred_check
              _
            $region66: #{tpu_custom_call.1} parent=63 // pred_check_branch
              %361 = sbr.rel (0) target = $region68
            $region67: #{tpu_custom_call.1} parent=63 // pred_region
              // Predicated region
              $region80: #{tpu_custom_call.1} parent=67 // pred_check
                _
              $region81: #{tpu_custom_call.1} parent=67 // pred_check_branch
                %379 = sbr.rel (0) target = $region83
              $region82: #{tpu_custom_call.1} parent=67 // pred_region
                loop: start=0, step=1, limit=1
                $region84: #{tpu_custom_call.1} parent=82 // loop_pre_header
                  _
                $region85: #{tpu_custom_call.1} parent=82 // loop_header
                  %s381 = sphi 0, %s385
                  %p382 = scmp.ge.s32.totalorder %s381, 1
                  %s386 = sphi %s357, %s357
                  %s387 = sphi %s355, %s355
                $region86: #{tpu_custom_call.1} parent=82 // loop_header_branch
                  %384 = sbr.rel (%p382) target = $region90
                $region87: #{tpu_custom_call.1} parent=82 // loop_body
                  %v388 = vld [vmem:[%s386] sm:$0xff]
                  %389 = vst [vmem:[%s387] sm:$0xff] %v388
                  %v390 = vld [vmem:[%s386 + $0x10] sm:$0xff]
                  %391 = vst [vmem:[%s387 + $0x8] sm:$0xff] %v390
                $region88: #{tpu_custom_call.1} parent=82 // loop_footer
                  %s385 = sadd.s32 1, %s381
                $region89: #{tpu_custom_call.1} parent=82 // loop_footer_branch
                  %380 = sbr.rel target = $region85
                $region90: #{tpu_custom_call.1} parent=82 // loop_exit
                  _
              $region83: #{tpu_custom_call.1} parent=67 // pred_fallthru
                _
              // Predicated region
              $region91: #{tpu_custom_call.1} parent=67 // pred_check
                _
              $region92: #{tpu_custom_call.1} parent=67 // pred_check_branch
                %393 = sbr.rel target = $region94
              $region93: #{tpu_custom_call.1} parent=67 // pred_region
                _
              $region94: #{tpu_custom_call.1} parent=67 // pred_fallthru
                _
            $region68: #{tpu_custom_call.1} parent=63 // pred_fallthru
              _
            // Predicated region
            $region69: #{tpu_custom_call.1} parent=63 // pred_check
              _
            $region70: #{tpu_custom_call.1} parent=63 // pred_check_branch
              %363 = sbr.rel target = $region72
            $region71: #{tpu_custom_call.1} parent=63 // pred_region
              %s365 = ssub.s32 256, 1
              loop: start=0, step=1, limit=1
              $region73: #{tpu_custom_call.1} parent=71 // loop_pre_header
                _
              $region74: #{tpu_custom_call.1} parent=71 // loop_header
                %s367 = sphi 0, %s371
                %p368 = scmp.ge.s32.totalorder %s367, 1
                %s372 = sphi %s357, %s357
                %s373 = sphi %s355, %s355
              $region75: #{tpu_custom_call.1} parent=71 // loop_header_branch
                %370 = sbr.rel (%p368) target = $region79
              $region76: #{tpu_custom_call.1} parent=71 // loop_body
                %v374 = vld [vmem:[%s372] sm:%s365]
                %375 = vst [vmem:[%s373] sm:%s365] %v374
                %v376 = vld [vmem:[%s372 + $0x10] sm:%s365]
                %377 = vst [vmem:[%s373 + $0x8] sm:%s365] %v376
              $region77: #{tpu_custom_call.1} parent=71 // loop_footer
                %s371 = sadd.s32 1, %s367
              $region78: #{tpu_custom_call.1} parent=71 // loop_footer_branch
                %366 = sbr.rel target = $region74
              $region79: #{tpu_custom_call.1} parent=71 // loop_exit
                _
            $region72: #{tpu_custom_call.1} parent=63 // pred_fallthru
              _
          $region64: #{tpu_custom_call.1} parent=59 // pred_fallthru
            _
          %394 = vnop
        $region60: #{tpu_custom_call.1} parent=51 // pred_fallthru
          _
      $region52: #{tpu_custom_call.1} parent=5 // pred_fallthru
        _
      %p395 = scmp.le.s32.totalorder 1, %s21
      %p396 = scmp.lt.s32.totalorder %s21, 3
      %p397 = pnand %p395, %p396
      %p398 = pneg %p397
      // Predicated region
      $region95: #{tpu_custom_call.1} parent=5 // pred_check
        _
      $region96: #{tpu_custom_call.1} parent=5 // pred_check_branch
        %400 = sbr.rel (%p397) target = $region98
      $region97: #{tpu_custom_call.1} parent=5 // pred_region
        %s401 = ssub.s32 %s21, 1
        // Predicated region
        $region99: #{tpu_custom_call.1} parent=97 // pred_check
          %p402 = pneg %p42
        $region100: #{tpu_custom_call.1} parent=97 // pred_check_branch
          %404 = sbr.rel (%p402) target = $region102
        $region101: #{tpu_custom_call.1} parent=97 // pred_region
          %405 = dma.done [#allocation4], 16
        $region102: #{tpu_custom_call.1} parent=97 // pred_fallthru
          _
        %s406 = sand.u32 %s81, 1
        %s407 = sand.u32 %s81, 1
        %s408 = smul.addr %s407, 16
        %s409 = scalar_lea.vmem [#allocation5], %s408
        // Predicated region
        $region103: #{tpu_custom_call.1} parent=97 // pred_check
          %p410 = pneg %p94
        $region104: #{tpu_custom_call.1} parent=97 // pred_check_branch
          %412 = sbr.rel (%p410) target = $region106
        $region105: #{tpu_custom_call.1} parent=97 // pred_region
          _
        $region106: #{tpu_custom_call.1} parent=97 // pred_fallthru
          _
        %413 = sfence
        %p414 = pneg %p42
        %p415 = pneg %p39
        %p416 = scmp.lt.s32.totalorder %s26, 1
        %s417 = scalar_select %p416, %s26, 1
        %s418 = smul.addr %s417, 2
        %s419 = scalar_lea.vmem %s1, %s418
        %p420 = pneg %p68
        %p421 = pneg %p65
        %s422 = sand.u32 %s81, 1
        %s423 = sand.u32 %s81, 1
        %s424 = smul.addr %s423, 16
        %s425 = scalar_lea.vmem [#allocation5], %s424
        %p426 = pneg %p94
        %p427 = pneg %p91
        %p428 = pneg %p115
        %p429 = pneg %p112
        %p430 = pneg %p136
        %p431 = pneg %p133
        %p432 = pneg %p157
        %p433 = pneg %p154
        %p434 = pneg %p178
        %p435 = pneg %p175
        %p436 = pneg %p199
        %p437 = pneg %p196
        %p438 = pneg %p220
        %p439 = pneg %p217
        %p440 = pneg %p241
        %p441 = pneg %p238
        %p442 = pneg %p262
        %p443 = pneg %p259
        %p444 = pneg %p288
        %p445 = pneg %p285
        %s446 = sand.u32 %s275, 1
        %s447 = scalar_lea.sflag [#allocation3], %s446
        %s448 = sand.u32 %s275, 1
        %s449 = smul.addr %s448, 16
        %s450 = scalar_lea.vmem [#allocation6], %s449
        %p451 = scmp.lt.s32.totalorder %s26, 1
        %s452 = scalar_select %p451, %s26, 1
        %s453 = smul.addr %s452, 2
        %s454 = scalar_lea.vmem %s1, %s453
        %s455 = sld [smem:[#allocation2]]
        %s456 = sld [smem:[#allocation2 + $0x1]]
        %v457 = vld [vmem:[%s454] sm:$0x1]
        %v458 = vld [vmem:[%s454 + $0x1] sm:$0x1]
        %v459 = vsub.f32 %v457, %v458
        %v460 = vstv %s456
        %v461 = vmul.f32 %v459, %v460
        %v462 = vstv %s455
        %v463 = vmul.f32 %v462, %v461
        %v464 = vadd.f32 %v463, %v458
        %v465 = vld [vmem:[%s3] sm:$0xff]
        %v466 = vld [vmem:[%s3 + $0x8] sm:$0xff]
        %468 = vset.pattern.permute.xlu0 0
        %469 = vperm.xlu0 %468, %v465
        %v470 = vpop.permute.xlu0 %469
        %473 = vset.pattern.permute.xlu0 0
        %474 = vperm.xlu0 %473, %v466
        %v475 = vpop.permute.xlu0 %474
        %v477 = vlaneseq
        %v478 = vshrl.u32 %v477, 7
        %v479 = vsub.s32 0, %v478
        %v480 = vrot.slane %v464, %v479
        %v481 = vmul.f32 %v470, %v480
        %v482 = vmul.f32 %v475, %v480
        %v483 = vld [vmem:[%s4] sm:$0xff]
        %v484 = vld [vmem:[%s4 + $0x8] sm:$0xff]
        %486 = vset.pattern.permute.xlu0 0
        %487 = vperm.xlu0 %486, %v483
        %v488 = vpop.permute.xlu0 %487
        %491 = vset.pattern.permute.xlu0 0
        %492 = vperm.xlu0 %491, %v484
        %v493 = vpop.permute.xlu0 %492
        %v495 = vadd.f32 %v481, %v488
        %v496 = vadd.f32 %v482, %v493
        %v497 = vand.u32 2147483647, %v495
        %vm498 = vcmp.le.f32.partialorder %v497, 0.7853982
        %vm499 = vcmp.lt.s32.totalorder %v495, 0
        %v500 = vand.u32 %v495, 2139095040
        %v501 = vshrl.u32 %v500, 23
        %v502 = vsub.s32 %v501, 127
        %v503 = vand.u32 2147483647, %v495
        %v504 = vand.u32 %v503, 8388607
        %v505 = vor.u32 %v504, 8388608
        %v506 = vsub.s32 0, %v505
        %v507 = vadd.s32 %v502, 1
        %vm508 = vcmp.gt.s32.totalorder %v507, 0
        %v509 = vsel %vm508, %v507, 0
        %v510 = vshrl.u32 %v509, 5
        %v511 = vand.u32 %v509, 31
        %v512 = vsub.s32 32, %v511
        %v513 = vshrl.u32 683565275, %v512
        %v514 = vshll.u32 683565275, %v511
        %v515 = vshrl.u32 2475754826, %v512
        %v516 = vor.u32 %v514, %v515
        %v517 = vshll.u32 2475754826, %v511
        %v518 = vshrl.u32 2131351028, %v512
        %v519 = vor.u32 %v517, %v518
        %v520 = vshll.u32 2131351028, %v511
        %v521 = vshrl.u32 2102212464, %v512
        %v522 = vor.u32 %v520, %v521
        %v523 = vshll.u32 2102212464, %v511
        %v524 = vshrl.u32 920167782, %v512
        %v525 = vor.u32 %v523, %v524
        %v526 = vshll.u32 920167782, %v511
        %v527 = vshrl.u32 1326507024, %v512
        %v528 = vor.u32 %v526, %v527
        %vm529 = vcmp.lt.s32.totalorder %v510, 1
        %vm530 = vcmp.lt.s32.totalorder %v510, 2
        %vm531 = vcmp.lt.s32.totalorder %v510, 3
        %vm532 = vcmp.lt.s32.totalorder %v510, 4
        %v533 = vsel %vm529, %v513, %v516
        %v534 = vsel %vm532, %v522, 2102212464
        %v535 = vsel %vm531, %v519, %v534
        %v536 = vsel %vm530, %v533, %v535
        %v537 = vsel %vm529, %v516, %v519
        %v538 = vsel %vm532, %v525, 920167782
        %v539 = vsel %vm531, %v522, %v538
        %v540 = vsel %vm530, %v537, %v539
        %v541 = vsel %vm529, %v519, %v522
        %v542 = vsel %vm532, %v528, 1326507024
        %v543 = vsel %vm531, %v525, %v542
        %v544 = vsel %vm530, %v541, %v543
        %v545 = vshll.u32 %v505, 8
        %v546 = vmul.u32.u64.compose %v545, %v544
        %v547 = vextract.low.u32 %v546
        %v548 = vextract.high.u32 %v546
        %v549 = vmul.u32.u64.compose %v545, %v540
        %v550 = vextract.low.u32 %v549
        %v551 = vextract.high.u32 %v549
        %v552 = vmul.u32 %v545, %v536
        %v553 = vadd.s32 %v548, %v550
        %vm554 = vc.u32 %v548, %v550
        %v555 = vadd.s32 %v551, 1
        %v556 = vsel %vm554, %v555, %v551
        %v557 = vadd.s32 %v552, %v556
        %v558 = vadd.s32 %v557, 536870912
        %v559 = vshrl.u32 %v558, 30
        %v560 = vshll.u32 %v559, 30
        %v561 = vsub.s32 %v557, %v560
        %vm562 = vcmp.lt.s32.totalorder %v561, 0
        %v563 = vsub.s32 0, %v561
        %v564 = vsel %vm562, %v563, %v561
        %v565 = vclz %v564
        %v566 = vsub.s32 %v565, 2
        %vm567 = vcmp.gt.s32.totalorder 0, %v566
        %v568 = vsel %vm567, 0, %v566
        %v569 = vsub.s32 32, %v568
        %v570 = vshll.u32 %v561, %v568
        %v571 = vshrl.u32 %v553, %v569
        %v572 = vor.u32 %v570, %v571
        %v573 = vsub.s32 4294967266, %v568
        %v574 = vadd.s32 %v573, 127
        %v575 = vshll.u32 %v574, 23
        %v576 = vor.u32 4788187, %v575
        %v577 = vand.u32 2147483647, %v576
        %v579 = vcvt.s32.f32 %v572
        %v580 = vmul.f32 %v579, %v577
        %v581 = vxor.u32 %v580, 2147483648
        %v582 = vsel %vm499, %v581, %v580
        %v583 = vsub.s32 4, %v559
        %v584 = vsel %vm499, %v583, %v559
        %v585 = vsel %vm498, %v495, %v582
        %v586 = vsel %vm498, 0, %v584
        %v587 = vcosq.f32.pop %v585
        %v588 = vsinq.f32.pop %v585
        %vm589 = vweird.f32 %v495
        %v590 = vand.u32 %v586, 3
        %vm591 = vcmp.lt.s32.totalorder %v590, 2
        %vm592 = vcmp.eq.s32.totalorder %v590, 0
        %v593 = vxor.u32 %v588, 2147483648
        %v594 = vsel %vm592, %v587, %v593
        %vm595 = vcmp.eq.s32.totalorder %v590, 2
        %v596 = vxor.u32 %v587, 2147483648
        %v597 = vsel %vm595, %v596, %v588
        %v598 = vsel %vm591, %v594, %v597
        %v599 = vsel %vm589, nan, %v598
        %v600 = vand.u32 2147483647, %v496
        %vm601 = vcmp.le.f32.partialorder %v600, 0.7853982
        %vm602 = vcmp.lt.s32.totalorder %v496, 0
        %v603 = vand.u32 %v496, 2139095040
        %v604 = vshrl.u32 %v603, 23
        %v605 = vsub.s32 %v604, 127
        %v606 = vand.u32 2147483647, %v496
        %v607 = vand.u32 %v606, 8388607
        %v608 = vor.u32 %v607, 8388608
        %v609 = vsub.s32 0, %v608
        %v610 = vadd.s32 %v605, 1
        %vm611 = vcmp.gt.s32.totalorder %v610, 0
        %v612 = vsel %vm611, %v610, 0
        %v613 = vshrl.u32 %v612, 5
        %v614 = vand.u32 %v612, 31
        %v615 = vsub.s32 32, %v614
        %v616 = vshrl.u32 683565275, %v615
        %v617 = vshll.u32 683565275, %v614
        %v618 = vshrl.u32 2475754826, %v615
        %v619 = vor.u32 %v617, %v618
        %v620 = vshll.u32 2475754826, %v614
        %v621 = vshrl.u32 2131351028, %v615
        %v622 = vor.u32 %v620, %v621
        %v623 = vshll.u32 2131351028, %v614
        %v624 = vshrl.u32 2102212464, %v615
        %v625 = vor.u32 %v623, %v624
        %v626 = vshll.u32 2102212464, %v614
        %v627 = vshrl.u32 920167782, %v615
        %v628 = vor.u32 %v626, %v627
        %v629 = vshll.u32 920167782, %v614
        %v630 = vshrl.u32 1326507024, %v615
        %v631 = vor.u32 %v629, %v630
        %vm632 = vcmp.lt.s32.totalorder %v613, 1
        %vm633 = vcmp.lt.s32.totalorder %v613, 2
        %vm634 = vcmp.lt.s32.totalorder %v613, 3
        %vm635 = vcmp.lt.s32.totalorder %v613, 4
        %v636 = vsel %vm632, %v616, %v619
        %v637 = vsel %vm635, %v625, 2102212464
        %v638 = vsel %vm634, %v622, %v637
        %v639 = vsel %vm633, %v636, %v638
        %v640 = vsel %vm632, %v619, %v622
        %v641 = vsel %vm635, %v628, 920167782
        %v642 = vsel %vm634, %v625, %v641
        %v643 = vsel %vm633, %v640, %v642
        %v644 = vsel %vm632, %v622, %v625
        %v645 = vsel %vm635, %v631, 1326507024
        %v646 = vsel %vm634, %v628, %v645
        %v647 = vsel %vm633, %v644, %v646
        %v648 = vshll.u32 %v608, 8
        %v649 = vmul.u32.u64.compose %v648, %v647
        %v650 = vextract.low.u32 %v649
        %v651 = vextract.high.u32 %v649
        %v652 = vmul.u32.u64.compose %v648, %v643
        %v653 = vextract.low.u32 %v652
        %v654 = vextract.high.u32 %v652
        %v655 = vmul.u32 %v648, %v639
        %v656 = vadd.s32 %v651, %v653
        %vm657 = vc.u32 %v651, %v653
        %v658 = vadd.s32 %v654, 1
        %v659 = vsel %vm657, %v658, %v654
        %v660 = vadd.s32 %v655, %v659
        %v661 = vadd.s32 %v660, 536870912
        %v662 = vshrl.u32 %v661, 30
        %v663 = vshll.u32 %v662, 30
        %v664 = vsub.s32 %v660, %v663
        %vm665 = vcmp.lt.s32.totalorder %v664, 0
        %v666 = vsub.s32 0, %v664
        %v667 = vsel %vm665, %v666, %v664
        %v668 = vclz %v667
        %v669 = vsub.s32 %v668, 2
        %vm670 = vcmp.gt.s32.totalorder 0, %v669
        %v671 = vsel %vm670, 0, %v669
        %v672 = vsub.s32 32, %v671
        %v673 = vshll.u32 %v664, %v671
        %v674 = vshrl.u32 %v656, %v672
        %v675 = vor.u32 %v673, %v674
        %v676 = vsub.s32 4294967266, %v671
        %v677 = vadd.s32 %v676, 127
        %v678 = vshll.u32 %v677, 23
        %v679 = vor.u32 4788187, %v678
        %v680 = vand.u32 2147483647, %v679
        %v682 = vcvt.s32.f32 %v675
        %v683 = vmul.f32 %v682, %v680
        %v684 = vxor.u32 %v683, 2147483648
        %v685 = vsel %vm602, %v684, %v683
        %v686 = vsub.s32 4, %v662
        %v687 = vsel %vm602, %v686, %v662
        %v688 = vsel %vm601, %v496, %v685
        %v689 = vsel %vm601, 0, %v687
        %v690 = vcosq.f32.pop %v688
        %v691 = vsinq.f32.pop %v688
        %vm692 = vweird.f32 %v496
        %v693 = vand.u32 %v689, 3
        %vm694 = vcmp.lt.s32.totalorder %v693, 2
        %vm695 = vcmp.eq.s32.totalorder %v693, 0
        %v696 = vxor.u32 %v691, 2147483648
        %v697 = vsel %vm695, %v690, %v696
        %vm698 = vcmp.eq.s32.totalorder %v693, 2
        %v699 = vxor.u32 %v690, 2147483648
        %v700 = vsel %vm698, %v699, %v691
        %v701 = vsel %vm694, %v697, %v700
        %v702 = vsel %vm692, nan, %v701
        %v703 = vld [vmem:[%s409] sm:$0xff]
        %v704 = vld [vmem:[%s409 + $0x8] sm:$0xff]
        %v705 = vadd.f32 %v703, %v599
        %v706 = vadd.f32 %v704, %v702
        %v707 = vld [vmem:[%s5] sm:$0xff]
        %v708 = vld [vmem:[%s5 + $0x8] sm:$0xff]
        %v709 = vld [vmem:[%s5 + $0x10] sm:$0xff]
        %v710 = vld [vmem:[%s5 + $0x18] sm:$0xff]
        %v711 = vld [vmem:[%s6] sm:$0xff]
        %v712 = vld [vmem:[%s6 + $0x8] sm:$0xff]
        %v713 = vld [vmem:[%s6 + $0x10] sm:$0xff]
        %v714 = vld [vmem:[%s6 + $0x18] sm:$0xff]
        %716 = vset.pattern.permute.xlu0 0
        %717 = vperm.xlu0 %716, %v711
        %v718 = vpop.permute.xlu0 %717
        %721 = vset.pattern.permute.xlu0 0
        %722 = vperm.xlu0 %721, %v712
        %v723 = vpop.permute.xlu0 %722
        %726 = vset.pattern.permute.xlu0 0
        %727 = vperm.xlu0 %726, %v713
        %v728 = vpop.permute.xlu0 %727
        %731 = vset.pattern.permute.xlu0 0
        %732 = vperm.xlu0 %731, %v714
        %v733 = vpop.permute.xlu0 %732
        %vm735 = vcmask 130048
        %v737 = vsel %vm735, %v707, 0
        %v740 = vsel %vm735, %v708, 0
        %v743 = vsel %vm735, %v709, 0
        %v746 = vsel %vm735, %v710, 0
        %748 = vmatprep.subr.mxu0 0.0
        %749 = vmatpush1.msra.mxu0 0.0
        %750 = vmatprep.subr.mxu0 0.0
        %751 = vmatpush1.msra.mxu0 0.0
        %752 = vmatprep.subr.mxu0 0.0
        %753 = vmatpush1.msra.mxu0 0.0
        %754 = vmatprep.subr.mxu0 0.0
        %755 = vmatpush1.msra.mxu0 0.0
        %756 = vmatprep.subr.mxu0 0.0
        %757 = vmatpush1.msra.mxu0 0.0
        %758 = vmatprep.subr.mxu0 0.0
        %759 = vmatpush1.msra.mxu0 0.0
        %760 = vmatprep.subr.mxu0 0.0
        %761 = vmatpush1.msra.mxu0 0.0
        %762 = vmatprep.subr.mxu0 0.0
        %763 = vmatpush1.msra.mxu0 0.0
        %764 = vmatprep.subr.mxu0 0.0
        %765 = vmatpush1.msra.mxu0 0.0
        %766 = vmatprep.subr.mxu0 0.0
        %767 = vmatpush1.msra.mxu0 0.0
        %768 = vmatprep.subr.mxu0 0.0
        %769 = vmatpush1.msra.mxu0 0.0
        %770 = vmatprep.subr.mxu0 0.0
        %771 = vmatpush1.msra.mxu0 0.0
        %772 = vmatprep.subr.mxu0 0.0
        %773 = vmatpush1.msra.mxu0 0.0
        %774 = vmatprep.subr.mxu0 0.0
        %775 = vmatpush1.msra.mxu0 0.0
        %776 = vmatprep.subr.mxu0 0.0
        %777 = vmatpush1.msra.mxu0 %v706
        %778 = vmatprep.subr.mxu0 0.0
        %779 = vmatpush1.msra.mxu0 %v705
        %780 = vmatprep.subr.mxu0 0.0
        %781 = vmatpush2.msra.mxu0 0.0
        %782 = vmatprep.subr.mxu0 0.0
        %783 = vmatpush2.msra.mxu0 0.0
        %784 = vmatprep.subr.mxu0 0.0
        %785 = vmatpush2.msra.mxu0 0.0
        %786 = vmatprep.subr.mxu0 0.0
        %787 = vmatpush2.msra.mxu0 0.0
        %788 = vmatprep.subr.mxu0 0.0
        %789 = vmatpush2.msra.mxu0 0.0
        %790 = vmatprep.subr.mxu0 0.0
        %791 = vmatpush2.msra.mxu0 0.0
        %792 = vmatprep.subr.mxu0 0.0
        %793 = vmatpush2.msra.mxu0 0.0
        %794 = vmatprep.subr.mxu0 0.0
        %795 = vmatpush2.msra.mxu0 0.0
        %796 = vmatprep.subr.mxu0 0.0
        %797 = vmatpush2.msra.mxu0 0.0
        %798 = vmatprep.subr.mxu0 0.0
        %799 = vmatpush2.msra.mxu0 0.0
        %800 = vmatprep.subr.mxu0 0.0
        %801 = vmatpush2.msra.mxu0 0.0
        %802 = vmatprep.subr.mxu0 0.0
        %803 = vmatpush2.msra.mxu0 0.0
        %804 = vmatprep.subr.mxu0 0.0
        %805 = vmatpush2.msra.mxu0 0.0
        %806 = vmatprep.subr.mxu0 0.0
        %807 = vmatpush2.msra.mxu0 0.0
        %808 = vmatprep.subr.mxu0 0.0
        %809 = vmatpush2.msra.mxu0 0.0
        %810 = vmatprep.subr.mxu0 0.0
        %811 = vmatpush2.msra.mxu0 0.0
        %812 = vmatprep.mubr.f32.mxu0 0.0
        %813 = vmatmul.mubr.f32.gmra.mxu0 %v737
        %v814 = vpop.f32.mrf.mxu0
        %v815 = vadd.f32 %v718, %v814
        %v816 = vpop.f32.mrf.mxu0
        %817 = vmatprep.mubr.f32.mxu0 0.0
        %818 = vmatmul.mubr.f32.gmra.mxu0 %v740
        %v819 = vpop.f32.mrf.mxu0
        %v820 = vadd.f32 %v723, %v819
        %v821 = vpop.f32.mrf.mxu0
        %822 = vmatprep.mubr.f32.mxu0 0.0
        %823 = vmatmul.mubr.f32.gmra.mxu0 %v743
        %v824 = vpop.f32.mrf.mxu0
        %v825 = vadd.f32 %v728, %v824
        %v826 = vpop.f32.mrf.mxu0
        %827 = vmatprep.mubr.f32.mxu0 0.0
        %828 = vmatmul.mubr.f32.gmra.mxu0 %v746
        %v829 = vpop.f32.mrf.mxu0
        %v830 = vadd.f32 %v733, %v829
        %v831 = vpop.f32.mrf.mxu0
        %832 = vdwg.mxu0
        %v833 = vtanh.pop %v815
        %v834 = vtanh.pop %v820
        %v835 = vtanh.pop %v825
        %v836 = vtanh.pop %v830
        %v837 = vld [vmem:[%s7] sm:$0xff]
        %v838 = vld [vmem:[%s7 + $0x8] sm:$0xff]
        %v839 = vld [vmem:[%s7 + $0x10] sm:$0xff]
        %v840 = vld [vmem:[%s7 + $0x18] sm:$0xff]
        %v841 = vld [vmem:[%s8] sm:$0xff]
        %v842 = vld [vmem:[%s8 + $0x8] sm:$0xff]
        %v843 = vld [vmem:[%s8 + $0x10] sm:$0xff]
        %v844 = vld [vmem:[%s8 + $0x18] sm:$0xff]
        %846 = vset.pattern.permute.xlu0 0
        %847 = vperm.xlu0 %846, %v841
        %v848 = vpop.permute.xlu0 %847
        %851 = vset.pattern.permute.xlu0 0
        %852 = vperm.xlu0 %851, %v842
        %v853 = vpop.permute.xlu0 %852
        %856 = vset.pattern.permute.xlu0 0
        %857 = vperm.xlu0 %856, %v843
        %v858 = vpop.permute.xlu0 %857
        %861 = vset.pattern.permute.xlu0 0
        %862 = vperm.xlu0 %861, %v844
        %v863 = vpop.permute.xlu0 %862
        %vm865 = vcmask 261120
        %v867 = vsel %vm865, %v837, 0
        %v870 = vsel %vm865, %v838, 0
        %v873 = vsel %vm865, %v839, 0
        %v876 = vsel %vm865, %v840, 0
        %878 = vmatprep.subr.mxu0 0.0
        %879 = vmatpush1.msra.mxu0 0.0
        %880 = vmatprep.subr.mxu0 0.0
        %881 = vmatpush1.msra.mxu0 0.0
        %882 = vmatprep.subr.mxu0 0.0
        %883 = vmatpush1.msra.mxu0 0.0
        %884 = vmatprep.subr.mxu0 0.0
        %885 = vmatpush1.msra.mxu0 0.0
        %886 = vmatprep.subr.mxu0 0.0
        %887 = vmatpush1.msra.mxu0 0.0
        %888 = vmatprep.subr.mxu0 0.0
        %889 = vmatpush1.msra.mxu0 0.0
        %890 = vmatprep.subr.mxu0 0.0
        %891 = vmatpush1.msra.mxu0 0.0
        %892 = vmatprep.subr.mxu0 0.0
        %893 = vmatpush1.msra.mxu0 0.0
        %894 = vmatprep.subr.mxu0 0.0
        %895 = vmatpush1.msra.mxu0 0.0
        %896 = vmatprep.subr.mxu0 0.0
        %897 = vmatpush1.msra.mxu0 0.0
        %898 = vmatprep.subr.mxu0 0.0
        %899 = vmatpush1.msra.mxu0 0.0
        %900 = vmatprep.subr.mxu0 0.0
        %901 = vmatpush1.msra.mxu0 0.0
        %902 = vmatprep.subr.mxu0 0.0
        %903 = vmatpush1.msra.mxu0 %v836
        %904 = vmatprep.subr.mxu0 0.0
        %905 = vmatpush1.msra.mxu0 %v835
        %906 = vmatprep.subr.mxu0 0.0
        %907 = vmatpush1.msra.mxu0 %v834
        %908 = vmatprep.subr.mxu0 0.0
        %909 = vmatpush1.msra.mxu0 %v833
        %910 = vmatprep.subr.mxu0 0.0
        %911 = vmatpush2.msra.mxu0 0.0
        %912 = vmatprep.subr.mxu0 0.0
        %913 = vmatpush2.msra.mxu0 0.0
        %914 = vmatprep.subr.mxu0 0.0
        %915 = vmatpush2.msra.mxu0 0.0
        %916 = vmatprep.subr.mxu0 0.0
        %917 = vmatpush2.msra.mxu0 0.0
        %918 = vmatprep.subr.mxu0 0.0
        %919 = vmatpush2.msra.mxu0 0.0
        %920 = vmatprep.subr.mxu0 0.0
        %921 = vmatpush2.msra.mxu0 0.0
        %922 = vmatprep.subr.mxu0 0.0
        %923 = vmatpush2.msra.mxu0 0.0
        %924 = vmatprep.subr.mxu0 0.0
        %925 = vmatpush2.msra.mxu0 0.0
        %926 = vmatprep.subr.mxu0 0.0
        %927 = vmatpush2.msra.mxu0 0.0
        %928 = vmatprep.subr.mxu0 0.0
        %929 = vmatpush2.msra.mxu0 0.0
        %930 = vmatprep.subr.mxu0 0.0
        %931 = vmatpush2.msra.mxu0 0.0
        %932 = vmatprep.subr.mxu0 0.0
        %933 = vmatpush2.msra.mxu0 0.0
        %934 = vmatprep.subr.mxu0 0.0
        %935 = vmatpush2.msra.mxu0 0.0
        %936 = vmatprep.subr.mxu0 0.0
        %937 = vmatpush2.msra.mxu0 0.0
        %938 = vmatprep.subr.mxu0 0.0
        %939 = vmatpush2.msra.mxu0 0.0
        %940 = vmatprep.subr.mxu0 0.0
        %941 = vmatpush2.msra.mxu0 0.0
        %942 = vmatprep.mubr.f32.mxu0 0.0
        %943 = vmatmul.mubr.f32.gmra.mxu0 %v867
        %v944 = vpop.f32.mrf.mxu0
        %v945 = vadd.f32 %v848, %v944
        %v946 = vpop.f32.mrf.mxu0
        %947 = vmatprep.mubr.f32.mxu0 0.0
        %948 = vmatmul.mubr.f32.gmra.mxu0 %v870
        %v949 = vpop.f32.mrf.mxu0
        %v950 = vadd.f32 %v853, %v949
        %v951 = vpop.f32.mrf.mxu0
        %952 = vmatprep.mubr.f32.mxu0 0.0
        %953 = vmatmul.mubr.f32.gmra.mxu0 %v873
        %v954 = vpop.f32.mrf.mxu0
        %v955 = vadd.f32 %v858, %v954
        %v956 = vpop.f32.mrf.mxu0
        %957 = vmatprep.mubr.f32.mxu0 0.0
        %958 = vmatmul.mubr.f32.gmra.mxu0 %v876
        %v959 = vpop.f32.mrf.mxu0
        %v960 = vadd.f32 %v863, %v959
        %v961 = vpop.f32.mrf.mxu0
        %962 = vdwg.mxu0
        %v963 = vtanh.pop %v945
        %v964 = vtanh.pop %v950
        %v965 = vtanh.pop %v955
        %v966 = vtanh.pop %v960
        %v967 = vld [vmem:[%s9] sm:$0xff]
        %v968 = vld [vmem:[%s9 + $0x8] sm:$0xff]
        %v969 = vld [vmem:[%s10] sm:$0xff]
        %v970 = vld [vmem:[%s10 + $0x8] sm:$0xff]
        %972 = vset.pattern.permute.xlu0 0
        %973 = vperm.xlu0 %972, %v969
        %v974 = vpop.permute.xlu0 %973
        %977 = vset.pattern.permute.xlu0 0
        %978 = vperm.xlu0 %977, %v970
        %v979 = vpop.permute.xlu0 %978
        %v982 = vsel %vm865, %v967, 0
        %v985 = vsel %vm865, %v968, 0
        %987 = vmatprep.subr.mxu0 0.0
        %988 = vmatpush1.msra.mxu0 0.0
        %989 = vmatprep.subr.mxu0 0.0
        %990 = vmatpush1.msra.mxu0 0.0
        %991 = vmatprep.subr.mxu0 0.0
        %992 = vmatpush1.msra.mxu0 0.0
        %993 = vmatprep.subr.mxu0 0.0
        %994 = vmatpush1.msra.mxu0 0.0
        %995 = vmatprep.subr.mxu0 0.0
        %996 = vmatpush1.msra.mxu0 0.0
        %997 = vmatprep.subr.mxu0 0.0
        %998 = vmatpush1.msra.mxu0 0.0
        %999 = vmatprep.subr.mxu0 0.0
        %1000 = vmatpush1.msra.mxu0 0.0
        %1001 = vmatprep.subr.mxu0 0.0
        %1002 = vmatpush1.msra.mxu0 0.0
        %1003 = vmatprep.subr.mxu0 0.0
        %1004 = vmatpush1.msra.mxu0 0.0
        %1005 = vmatprep.subr.mxu0 0.0
        %1006 = vmatpush1.msra.mxu0 0.0
        %1007 = vmatprep.subr.mxu0 0.0
        %1008 = vmatpush1.msra.mxu0 0.0
        %1009 = vmatprep.subr.mxu0 0.0
        %1010 = vmatpush1.msra.mxu0 0.0
        %1011 = vmatprep.subr.mxu0 0.0
        %1012 = vmatpush1.msra.mxu0 %v966
        %1013 = vmatprep.subr.mxu0 0.0
        %1014 = vmatpush1.msra.mxu0 %v965
        %1015 = vmatprep.subr.mxu0 0.0
        %1016 = vmatpush1.msra.mxu0 %v964
        %1017 = vmatprep.subr.mxu0 0.0
        %1018 = vmatpush1.msra.mxu0 %v963
        %1019 = vmatprep.subr.mxu0 0.0
        %1020 = vmatpush2.msra.mxu0 0.0
        %1021 = vmatprep.subr.mxu0 0.0
        %1022 = vmatpush2.msra.mxu0 0.0
        %1023 = vmatprep.subr.mxu0 0.0
        %1024 = vmatpush2.msra.mxu0 0.0
        %1025 = vmatprep.subr.mxu0 0.0
        %1026 = vmatpush2.msra.mxu0 0.0
        %1027 = vmatprep.subr.mxu0 0.0
        %1028 = vmatpush2.msra.mxu0 0.0
        %1029 = vmatprep.subr.mxu0 0.0
        %1030 = vmatpush2.msra.mxu0 0.0
        %1031 = vmatprep.subr.mxu0 0.0
        %1032 = vmatpush2.msra.mxu0 0.0
        %1033 = vmatprep.subr.mxu0 0.0
        %1034 = vmatpush2.msra.mxu0 0.0
        %1035 = vmatprep.subr.mxu0 0.0
        %1036 = vmatpush2.msra.mxu0 0.0
        %1037 = vmatprep.subr.mxu0 0.0
        %1038 = vmatpush2.msra.mxu0 0.0
        %1039 = vmatprep.subr.mxu0 0.0
        %1040 = vmatpush2.msra.mxu0 0.0
        %1041 = vmatprep.subr.mxu0 0.0
        %1042 = vmatpush2.msra.mxu0 0.0
        %1043 = vmatprep.subr.mxu0 0.0
        %1044 = vmatpush2.msra.mxu0 0.0
        %1045 = vmatprep.subr.mxu0 0.0
        %1046 = vmatpush2.msra.mxu0 0.0
        %1047 = vmatprep.subr.mxu0 0.0
        %1048 = vmatpush2.msra.mxu0 0.0
        %1049 = vmatprep.subr.mxu0 0.0
        %1050 = vmatpush2.msra.mxu0 0.0
        %1051 = vmatprep.mubr.f32.mxu0 0.0
        %1052 = vmatmul.mubr.f32.gmra.mxu0 %v982
        %v1053 = vpop.f32.mrf.mxu0
        %v1054 = vadd.f32 %v974, %v1053
        %v1055 = vpop.f32.mrf.mxu0
        %1056 = vmatprep.mubr.f32.mxu0 0.0
        %1057 = vmatmul.mubr.f32.gmra.mxu0 %v985
        %v1058 = vpop.f32.mrf.mxu0
        %v1059 = vadd.f32 %v979, %v1058
        %v1060 = vpop.f32.mrf.mxu0
        %1061 = vdwg.mxu0
        %v1062 = vlaneseq
        %v1063 = vshrl.u32 %v1062, 7
        %v1064 = vsub.s32 0, %v1063
        %v1065 = vrot.slane %v461, %v1064
        %v1066 = vmul.f32 %v1054, %v1065
        %v1067 = vmul.f32 %v1059, %v1065
        %1068 = vst [vmem:[%s450] sm:$0xff] %v1066
        %1069 = vst [vmem:[%s450 + $0x8] sm:$0xff] %v1067
        %s1070 = sand.u32 %s275, 1
        %s1071 = scalar_lea.sflag [#allocation3], %s1070
        %s1072 = sand.u32 %s275, 1
        %s1073 = smul.addr %s1072, 16
        %s1074 = scalar_lea.vmem [#allocation6], %s1073
        // Predicated region
        $region107: #{tpu_custom_call.1} parent=97 // pred_check
          %p1075 = pneg %p285
        $region108: #{tpu_custom_call.1} parent=97 // pred_check_branch
          %1077 = sbr.rel (%p1075) target = $region110
        $region109: #{tpu_custom_call.1} parent=97 // pred_region
          %s1079 = ssub.s32 256, 256
          %1080 = vsyncadd %s1071, %s1079
          %s1081 = smul.addr %s26, 128
          %s1082 = scalar_lea.hbm %s11, %s1081
          %s1083 = sshll.u32 %s1074, 4
          %s1084 = int_to_ptr.vmem [resolvable:$true] %s1083
          %1089 = dma.vmem_to_hbm [thread:$0]  %s1084, 256, %s1082, %s1071, 128, 256, 8
        $region110: #{tpu_custom_call.1} parent=97 // pred_fallthru
          _
      $region98: #{tpu_custom_call.1} parent=5 // pred_fallthru
        _
      %p1090 = scmp.le.s32.totalorder 2, %s21
      // Predicated region
      $region111: #{tpu_custom_call.1} parent=5 // pred_check
        %p1091 = pneg %p1090
      $region112: #{tpu_custom_call.1} parent=5 // pred_check_branch
        %1093 = sbr.rel (%p1091) target = $region114
      $region113: #{tpu_custom_call.1} parent=5 // pred_region
        %s1094 = ssub.s32 %s21, 2
        // Predicated region
        $region115: #{tpu_custom_call.1} parent=113 // pred_check
          %p1095 = pneg %p291
        $region116: #{tpu_custom_call.1} parent=113 // pred_check_branch
          %1097 = sbr.rel (%p1095) target = $region118
        $region117: #{tpu_custom_call.1} parent=113 // pred_region
          %s1098 = sand.u32 %s276, 1
          %s1099 = scalar_lea.sflag [#allocation3], %s1098
          %s1100 = sand.u32 %s276, 1
          %s1101 = smul.addr %s1100, 16
          %s1102 = scalar_lea.vmem [#allocation6], %s1101
          %1103 = dma.done %s1099, 256
        $region118: #{tpu_custom_call.1} parent=113 // pred_fallthru
          _
      $region114: #{tpu_custom_call.1} parent=5 // pred_fallthru
        _
    $region6: #{tpu_custom_call.1} parent=1 // loop_footer
      %s25 = sadd.s32 1, %s21
    $region7: #{tpu_custom_call.1} parent=1 // loop_footer_branch
      %20 = sbr.rel target = $region3
    $region8: #{tpu_custom_call.1} parent=1 // loop_exit
      _
    %1104 = vsyncpa [#allocation3], 1
    %s1105 = scalar_lea.sflag [#allocation3], 1
    %1106 = vsyncpa %s1105, 1
    %1107 = vsyncpa [#allocation4], 1
    %s1108 = scalar_lea.sflag [#allocation4], 1
    %1109 = vsyncpa %s1108, 1

</llo_original>
